<compile_context>
chip_gen: v6e
topology: v6e:2x2x1
jax: 0.10.0
libtpu: 0.0.40
codegen_flags: <defaults>
</compile_context>

<pallas_src>
import functools

import jax
import jax.numpy as jnp
from jax.experimental import pallas as pl
from jax.experimental.pallas import tpu as pltpu


def _round_up(x, m):
    return (x + m - 1) // m * m


def _linear_lora_kernel(lw_ref, x_ref, wt_ref, b_ref, a_ref, bmat_ref, o_ref,
                        xa_ref, *, rank, upproj_on_vpu, cache_xa):
    # lw_ref   : [1]          SMEM   scalar LoRA weight
    # x_ref    : [tm, Kp]     VMEM   activation row tile (resident across j)
    # wt_ref   : [Kp, tn]     VMEM   W^T tile (streamed)
    # b_ref    : [1,  tn]     VMEM   bias tile
    # a_ref    : [Kp, rank]   VMEM   LoRA A (whole)
    # bmat_ref : [rank, tn]   VMEM   LoRA B tile
    # o_ref    : [tm, tn]     VMEM   output tile
    # xa_ref   : [tm, rank]   VMEM   f32 scratch: w * (x @ A)
    x = x_ref[...]

    def _down_proj():
        xa = jnp.dot(x, a_ref[...], preferred_element_type=jnp.float32)
        xa_ref[...] = xa * lw_ref[0]

    if cache_xa:
        # Down-projection is independent of the output tile; inner (N) axis is
        # "arbitrary" so j == 0 always runs first for each row tile.
        @pl.when(pl.program_id(1) == 0)
        def _():
            _down_proj()
    else:
        _down_proj()

    # Base linear path on the MXU, f32 accumulation.
    acc = jnp.dot(x, wt_ref[...], preferred_element_type=jnp.float32)
    acc = acc + b_ref[...].astype(jnp.float32)

    xa = xa_ref[...]                                    # [tm, rank] f32
    if upproj_on_vpu:
        # Tiny rank: a K=rank MXU pass is fill/drain dominated -> do the
        # up-projection as `rank` broadcast AXPYs on the VPU (static unroll).
        bmat = bmat_ref[...].astype(jnp.float32)        # [rank, tn]
        for r in range(rank):
            acc = acc + xa[:, r:r + 1] * bmat[r:r + 1, :]
    else:
        acc = acc + jnp.dot(xa, bmat_ref[...].astype(jnp.float32),
                            preferred_element_type=jnp.float32)

    o_ref[...] = acc.astype(o_ref.dtype)


def linear_lora_forward(x, wt, bias, a_lora, b_lora, lora_weight,
                        *, tm=256, tn=512):
    """Fused y = x @ wt + bias + lora_weight * ((x @ A) @ B).

    `wt` is the nn.Linear weight stored PRE-TRANSPOSED as
    [in_features, out_features].  x: [..., in_features] -> [..., out_features].
    """
    orig_shape = x.shape
    in_dim = orig_shape[-1]
    out_dim = wt.shape[1]
    rank = a_lora.shape[1]
    dtype = x.dtype
    itemsize = jnp.dtype(dtype).itemsize

    x2d = x.reshape(-1, in_dim)
    M = x2d.shape[0]

    # ---- tile selection: hardware aligned + VMEM budgeted --------------------
    sub = 8 if itemsize == 4 else 16                         # sublane alignment
    tm_eff = max(sub, min(_round_up(tm, sub), _round_up(M, sub)))
    tn_eff = min(_round_up(tn, 128), _round_up(out_dim, 128))  # lane-dense out
    Kp = _round_up(in_dim, 128)                                # lane-dense in

    def vmem_est(bm, bn):
        return int(2 * (bm * Kp + Kp * bn + bm * bn) * itemsize     # x, W^T, out (2-buf)
                   + 2 * (Kp * rank + rank * bn + bn) * itemsize    # A, B, bias
                   + 4 * (bm * bn + bm * max(rank, 128)))           # f32 acc + xa scratch

    budget = 48 * 1024 * 1024          # headroom for v7x (64 MiB physical VMEM)
    while vmem_est(tm_eff, tn_eff) > budget and (tm_eff > sub or tn_eff > 128):
        if tn_eff >= tm_eff and tn_eff > 128:
            tn_eff = max(128, (tn_eff // 2) // 128 * 128)
        elif tm_eff > sub:
            tm_eff = max(sub, (tm_eff // 2) // sub * sub)
        else:
            break

    Mp = _round_up(M, tm_eff)
    Np = _round_up(out_dim, tn_eff)

    # ---- padding (no-op for already-aligned model sizes) ---------------------
    if (Mp, Kp) != (M, in_dim):
        x2d = jnp.pad(x2d, ((0, Mp - M), (0, Kp - in_dim)))
    if (Kp, Np) != (in_dim, out_dim):
        wt = jnp.pad(wt, ((0, Kp - in_dim), (0, Np - out_dim)))
        a_lora = jnp.pad(a_lora, ((0, Kp - in_dim), (0, 0)))
        b_lora = jnp.pad(b_lora, ((0, 0), (0, Np - out_dim)))
        bias = jnp.pad(bias, ((0, Np - out_dim),))
    bias2d = bias.reshape(1, Np)

    lw = jnp.asarray(lora_weight, jnp.float32).reshape((1,))

    m_tiles = Mp // tm_eff
    n_tiles = Np // tn_eff
    cache_xa = (m_tiles > 1) and (n_tiles > 1)

    kernel = functools.partial(_linear_lora_kernel, rank=rank,
                               upproj_on_vpu=(rank <= 8), cache_xa=cache_xa)

    vmem_limit = int(min(max(2 * vmem_est(tm_eff, tn_eff), 32 * 1024 * 1024),
                         64 * 1024 * 1024))

    out2d = pl.pallas_call(
        kernel,
        out_shape=jax.ShapeDtypeStruct((Mp, Np), dtype),
        grid=(m_tiles, n_tiles),       # M (rows) outer, N (out features) inner
        in_specs=[
            pl.BlockSpec(memory_space=pltpu.MemorySpace.SMEM),      # lora weight
            pl.BlockSpec((tm_eff, Kp), lambda i, j: (i, 0)),        # x rows (resident over j)
            pl.BlockSpec((Kp, tn_eff), lambda i, j: (0, j)),        # W^T tile
            pl.BlockSpec((1, tn_eff), lambda i, j: (0, j)),         # bias tile
            pl.BlockSpec((Kp, rank), lambda i, j: (0, 0)),          # A (whole)
            pl.BlockSpec((rank, tn_eff), lambda i, j: (0, j)),      # B tile
        ],
        out_specs=pl.BlockSpec((tm_eff, tn_eff), lambda i, j: (i, j)),
        scratch_shapes=[pltpu.VMEM((tm_eff, rank), jnp.float32)],
        compiler_params=pltpu.CompilerParams(
            dimension_semantics=(("parallel", "arbitrary") if cache_xa
                                 else ("parallel", "parallel")),
            vmem_limit_bytes=vmem_limit,
        ),
    )(lw, x2d, wt, bias2d, a_lora, b_lora)

    out2d = out2d[:M, :out_dim]
    return out2d.reshape(*orig_shape[:-1], out_dim)


def _reference(x, wt, bias, a_lora, b_lora, lora_weight):
    hi = jax.lax.Precision.HIGHEST
    base = jnp.matmul(x, wt, precision=hi) + bias
    lora = lora_weight * jnp.matmul(jnp.matmul(x, a_lora, precision=hi),
                                    b_lora, precision=hi)
    return base + lora


if __name__ == "__main__":
    key = jax.random.PRNGKey(0)
    fwd = jax.jit(linear_lora_forward, static_argnames=("tm", "tn"))

    # ---- test 1: module-sized shapes (batch=2, seq=8, in=32, out=32, rank=2) --
    batch, seq, in_dim, out_dim, rank = 2, 8, 32, 32, 2
    lora_w = 0.5
    kx, kw, kb, ka, kbb = jax.random.split(key, 5)

    x = jax.random.normal(kx, (batch, seq, in_dim), dtype=jnp.float32)
    bound = 1.0 / float(in_dim) ** 0.5
    w_linear = jax.random.uniform(kw, (out_dim, in_dim), jnp.float32, -bound, bound)
    b_linear = jax.random.uniform(kb, (out_dim,), jnp.float32, -bound, bound)
    a_lora = jax.random.normal(ka, (in_dim, rank), jnp.float32) / float(rank) ** 0.5
    b_lora_init = jnp.zeros((rank, out_dim), jnp.float32)           # module init
    b_lora_trained = 0.1 * jax.random.normal(kbb, (rank, out_dim), jnp.float32)

    wt = jnp.asarray(w_linear.T)      # pre-transposed once, outside the hot path

    out_init = jax.block_until_ready(fwd(x, wt, b_linear, a_lora, b_lora_init, lora_w))
    out_trained = jax.block_until_ready(fwd(x, wt, b_linear, a_lora, b_lora_trained, lora_w))

    ref_init = _reference(x, wt, b_linear, a_lora, b_lora_init, lora_w)
    ref_trained = _reference(x, wt, b_linear, a_lora, b_lora_trained, lora_w)

    assert out_init.shape == (batch, seq, out_dim)
    assert jnp.allclose(out_init, ref_init, atol=1e-3, rtol=1e-3)
    assert jnp.allclose(out_trained, ref_trained, atol=1e-3, rtol=1e-3)

    # ---- test 2: multi-tile + padding path (cached LoRA down-projection) ------
    b2, s2, in2, out2, rk2 = 2, 16, 200, 200, 4
    k1, k2, k3, k4, k5 = jax.random.split(jax.random.PRNGKey(1), 5)
    x2 = jax.random.normal(k1, (b2, s2, in2), dtype=jnp.float32)
    bound2 = 1.0 / float(in2) ** 0.5
    w2 = jax.random.uniform(k2, (out2, in2), jnp.float32, -bound2, bound2)
    bias2 = jax.random.uniform(k3, (out2,), jnp.float32, -bound2, bound2)
    a2 = jax.random.normal(k4, (in2, rk2), jnp.float32) / float(rk2) ** 0.5
    bl2 = 0.05 * jax.random.normal(k5, (rk2, out2), jnp.float32)
    wt2 = jnp.asarray(w2.T)

    out2_k = jax.block_until_ready(fwd(x2, wt2, bias2, a2, bl2, 0.25, tm=16, tn=128))
    ref2 = _reference(x2, wt2, bias2, a2, bl2, 0.25)
    assert out2_k.shape == (b2, s2, out2)
    assert jnp.allclose(out2_k, ref2, atol=1e-3, rtol=1e-3)

    print("KERNEL_OK")
</pallas_src>

<mosaic_0001>
module attributes {stable_mosaic.version = 11 : i64} {
  func.func @_linear_lora_kernel(%arg0: i32, %arg1: i32, %arg2: memref<1xf32, #tpu.memory_space<smem>>, %arg3: memref<16x128xf32, #tpu.memory_space<vmem>>, %arg4: memref<128x128xf32, #tpu.memory_space<vmem>>, %arg5: memref<1x128xf32, #tpu.memory_space<vmem>>, %arg6: memref<128x2xf32, #tpu.memory_space<vmem>>, %arg7: memref<2x128xf32, #tpu.memory_space<vmem>>, %arg8: memref<16x128xf32, #tpu.memory_space<vmem>>, %arg9: memref<16x2xf32, #tpu.memory_space<vmem>>) attributes {dimension_semantics = [#tpu.dimension_semantics<parallel>, #tpu.dimension_semantics<parallel>], iteration_bounds = array<i64: 1, 1>, scalar_prefetch = 0 : i64, scratch_operands = 1 : i64, tpu.core_type = #tpu.core_type<tc>, window_params = [{transform_indices = @transform_0, window_bounds = array<i64: 1>}, {transform_indices = @transform_1, window_bounds = array<i64: 16, 128>}, {transform_indices = @transform_2, window_bounds = array<i64: 128, 128>}, {transform_indices = @transform_3, window_bounds = array<i64: 1, 128>}, {pipeline_mode = #tpu.pipeline_mode<synchronous>, transform_indices = @transform_4, window_bounds = array<i64: 128, 2>}, {transform_indices = @transform_5, window_bounds = array<i64: 2, 128>}, {transform_indices = @transform_6, window_bounds = array<i64: 16, 128>}]} {
    %c0 = arith.constant 0 : index
    %c0_0 = arith.constant 0 : index
    %0 = vector.load %arg3[%c0, %c0_0] : memref<16x128xf32, #tpu.memory_space<vmem>>, vector<16x128xf32>
    %c0_1 = arith.constant 0 : index
    %c0_2 = arith.constant 0 : index
    %1 = vector.load %arg6[%c0_1, %c0_2] : memref<128x2xf32, #tpu.memory_space<vmem>>, vector<128x2xf32>
    %cst = arith.constant dense<0.000000e+00> : vector<16x2xf32>
    %2 = tpu.matmul %0, %1, %cst {dimension_numbers = #tpu.dot_dimension_numbers<[1], [0], [0], [1], [0, 0, 1, 1], [], []>} : vector<16x128xf32>, vector<128x2xf32>, vector<16x2xf32> -> vector<16x2xf32>
    %c0_3 = arith.constant 0 : index
    %3 = memref.load %arg2[%c0_3] : memref<1xf32, #tpu.memory_space<smem>>
    %4 = vector.broadcast %3 : f32 to vector<16x2xf32>
    %5 = arith.mulf %2, %4 : vector<16x2xf32>
    %c0_4 = arith.constant 0 : index
    %c0_5 = arith.constant 0 : index
    %6 = vector.load %arg9[%c0_4, %c0_5] : memref<16x2xf32, #tpu.memory_space<vmem>>, vector<16x2xf32>
    tpu.vector_store %arg9[%c0_4, %c0_5], %5 {strides = array<i32>} : memref<16x2xf32, #tpu.memory_space<vmem>>, vector<16x2xf32>,
    %c0_6 = arith.constant 0 : index
    %c0_7 = arith.constant 0 : index
    %7 = vector.load %arg4[%c0_6, %c0_7] : memref<128x128xf32, #tpu.memory_space<vmem>>, vector<128x128xf32>
    %cst_8 = arith.constant dense<0.000000e+00> : vector<16x128xf32>
    %8 = tpu.matmul %0, %7, %cst_8 {dimension_numbers = #tpu.dot_dimension_numbers<[1], [0], [0], [1], [0, 0, 1, 1], [], []>} : vector<16x128xf32>, vector<128x128xf32>, vector<16x128xf32> -> vector<16x128xf32>
    %c0_9 = arith.constant 0 : index
    %c0_10 = arith.constant 0 : index
    %9 = vector.load %arg5[%c0_9, %c0_10] : memref<1x128xf32, #tpu.memory_space<vmem>>, vector<1x128xf32>
    %10 = vector.broadcast %9 : vector<1x128xf32> to vector<16x128xf32>
    %11 = arith.addf %8, %10 : vector<16x128xf32>
    %c0_11 = arith.constant 0 : index
    %c0_12 = arith.constant 0 : index
    %12 = vector.load %arg9[%c0_11, %c0_12] : memref<16x2xf32, #tpu.memory_space<vmem>>, vector<16x2xf32>
    %c0_13 = arith.constant 0 : index
    %c0_14 = arith.constant 0 : index
    %13 = vector.load %arg7[%c0_13, %c0_14] : memref<2x128xf32, #tpu.memory_space<vmem>>, vector<2x128xf32>
    %14 = vector.extract_strided_slice %12 {offsets = [0, 0], sizes = [16, 1], strides = [1, 1]} : vector<16x2xf32> to vector<16x1xf32>
    %15 = vector.extract_strided_slice %13 {offsets = [0, 0], sizes = [1, 128], strides = [1, 1]} : vector<2x128xf32> to vector<1x128xf32>
    %16 = vector.broadcast %14 : vector<16x1xf32> to vector<16x128xf32>
    %17 = vector.broadcast %15 : vector<1x128xf32> to vector<16x128xf32>
    %18 = arith.mulf %16, %17 : vector<16x128xf32>
    %19 = arith.addf %11, %18 : vector<16x128xf32>
    %20 = vector.extract_strided_slice %12 {offsets = [0, 1], sizes = [16, 1], strides = [1, 1]} : vector<16x2xf32> to vector<16x1xf32>
    %21 = vector.extract_strided_slice %13 {offsets = [1, 0], sizes = [1, 128], strides = [1, 1]} : vector<2x128xf32> to vector<1x128xf32>
    %22 = vector.broadcast %20 : vector<16x1xf32> to vector<16x128xf32>
    %23 = vector.broadcast %21 : vector<1x128xf32> to vector<16x128xf32>
    %24 = arith.mulf %22, %23 : vector<16x128xf32>
    %25 = arith.addf %19, %24 : vector<16x128xf32>
    %c0_15 = arith.constant 0 : index
    %c0_16 = arith.constant 0 : index
    %26 = vector.load %arg8[%c0_15, %c0_16] : memref<16x128xf32, #tpu.memory_space<vmem>>, vector<16x128xf32>
    tpu.vector_store %arg8[%c0_15, %c0_16], %25 {strides = array<i32>} : memref<16x128xf32, #tpu.memory_space<vmem>>, vector<16x128xf32>,
    return
  }
  func.func @transform_0(%arg0: i32, %arg1: i32) -> i32 {
    %c0_i32 = arith.constant 0 : i32
    %c0_i32_0 = arith.constant 0 : i32
    return %c0_i32 : i32
  }
  func.func @transform_1(%arg0: i32, %arg1: i32) -> (i32, i32) {
    %c0_i32 = arith.constant 0 : i32
    %c0_i32_0 = arith.constant 0 : i32
    return %arg0, %c0_i32 : i32, i32
  }
  func.func @transform_2(%arg0: i32, %arg1: i32) -> (i32, i32) {
    %c0_i32 = arith.constant 0 : i32
    %c0_i32_0 = arith.constant 0 : i32
    return %c0_i32, %arg1 : i32, i32
  }
  func.func @transform_3(%arg0: i32, %arg1: i32) -> (i32, i32) {
    %c0_i32 = arith.constant 0 : i32
    %c0_i32_0 = arith.constant 0 : i32
    return %c0_i32, %arg1 : i32, i32
  }
  func.func @transform_4(%arg0: i32, %arg1: i32) -> (i32, i32) {
    %c0_i32 = arith.constant 0 : i32
    %c0_i32_0 = arith.constant 0 : i32
    %c0_i32_1 = arith.constant 0 : i32
    return %c0_i32, %c0_i32_0 : i32, i32
  }
  func.func @transform_5(%arg0: i32, %arg1: i32) -> (i32, i32) {
    %c0_i32 = arith.constant 0 : i32
    %c0_i32_0 = arith.constant 0 : i32
    return %c0_i32, %arg1 : i32, i32
  }
  func.func @transform_6(%arg0: i32, %arg1: i32) -> (i32, i32) {
    %c0_i32 = arith.constant 0 : i32
    return %arg0, %arg1 : i32, i32
  }
}

</mosaic_0001>

<llo_original>
// kernel: linear_lora_forward.1
$region0: #{linear_lora_forward.1}
  #allocation0 [shape = 'u32[]', space=smem, size = 0x4, offset = 0x4, fixed_abs, tag = 'smem constant byte address 0x4 - core index']
  #allocation1 [shape = 'u32[144,128]{1,0:T(1,128)}', space=vmem, size = 0x12000, scoped, tag = 'internal scratch']
  #allocation2 [shape = 'f32[16,2]{1,0:T(8,128)}', space=vmem, size = 0x2000, scoped, tag = 'scratch operand']
  #allocation3 [shape = 'f32[1]{0:T(128)S(6)}', space=smem, size = 0x200, scoped, tag = 'scoped memory for linear_lora_forward.1']
  %s0 = inlined_call_operand.<no memory space> [shape: f32[1], index: 0, kind: input, shape index: {}]
  %s1 = inlined_call_operand.vmem [shape: f32[16,128], index: 1, kind: input, shape index: {}]
  %s2 = inlined_call_operand.vmem [shape: f32[128,128], index: 2, kind: input, shape index: {}]
  %s3 = inlined_call_operand.vmem [shape: f32[1,128], index: 3, kind: input, shape index: {}]
  %s4 = inlined_call_operand.vmem [shape: f32[128,2], index: 4, kind: input, shape index: {}]
  %s5 = inlined_call_operand.vmem [shape: f32[2,128], index: 5, kind: input, shape index: {}]
  %s6 = inlined_call_operand.vmem [shape: f32[16,128], index: 6, kind: output, shape index: {}]
  %s7 = sld [smem:[#allocation0]]
  $region34: #{linear_lora_forward.1} parent=0
    _
  %s9 = ssub.s32 1, %s7
  %s10 = scalar_select 0, %s9, %s7
  %11 = sst [smem:[#allocation3]] %s0
  // Predicated region
  $region2: #{linear_lora_forward.1} parent=0 // pred_check
    _
  $region3: #{linear_lora_forward.1} parent=0 // pred_check_branch
    %13 = sbr.rel (0) target = $region5
  $region4: #{linear_lora_forward.1} parent=0 // pred_region
    _
  $region5: #{linear_lora_forward.1} parent=0 // pred_fallthru
    _
  // Predicated region
  $region6: #{linear_lora_forward.1} parent=0 // pred_check
    _
  $region7: #{linear_lora_forward.1} parent=0 // pred_check_branch
    %15 = sbr.rel (0) target = $region9
  $region8: #{linear_lora_forward.1} parent=0 // pred_region
    _
  $region9: #{linear_lora_forward.1} parent=0 // pred_fallthru
    _
  // Predicated region
  $region10: #{linear_lora_forward.1} parent=0 // pred_check
    _
  $region11: #{linear_lora_forward.1} parent=0 // pred_check_branch
    %17 = sbr.rel (0) target = $region13
  $region12: #{linear_lora_forward.1} parent=0 // pred_region
    _
  $region13: #{linear_lora_forward.1} parent=0 // pred_fallthru
    _
  // Predicated region
  $region14: #{linear_lora_forward.1} parent=0 // pred_check
    _
  $region15: #{linear_lora_forward.1} parent=0 // pred_check_branch
    %19 = sbr.rel (0) target = $region17
  $region16: #{linear_lora_forward.1} parent=0 // pred_region
    _
  $region17: #{linear_lora_forward.1} parent=0 // pred_fallthru
    _
  // Predicated region
  $region18: #{linear_lora_forward.1} parent=0 // pred_check
    _
  $region19: #{linear_lora_forward.1} parent=0 // pred_check_branch
    %21 = sbr.rel (0) target = $region21
  $region20: #{linear_lora_forward.1} parent=0 // pred_region
    _
  $region21: #{linear_lora_forward.1} parent=0 // pred_fallthru
    _
  // Predicated region
  $region22: #{linear_lora_forward.1} parent=0 // pred_check
    _
  $region23: #{linear_lora_forward.1} parent=0 // pred_check_branch
    %23 = sbr.rel (0) target = $region25
  $region24: #{linear_lora_forward.1} parent=0 // pred_region
    _
  $region25: #{linear_lora_forward.1} parent=0 // pred_fallthru
    _
  %v24 = vld [vmem:[%s1] sm:$0xff]
  %v25 = vld [vmem:[%s1 + $0x8] sm:$0xff]
  %v26 = vld [vmem:[%s4] sm:$0xff]
  %v27 = vld [vmem:[%s4 + $0x8] sm:$0xff]
  %v28 = vld [vmem:[%s4 + $0x10] sm:$0xff]
  %v29 = vld [vmem:[%s4 + $0x18] sm:$0xff]
  %v30 = vld [vmem:[%s4 + $0x20] sm:$0xff]
  %v31 = vld [vmem:[%s4 + $0x28] sm:$0xff]
  %v32 = vld [vmem:[%s4 + $0x30] sm:$0xff]
  %v33 = vld [vmem:[%s4 + $0x38] sm:$0xff]
  %v34 = vld [vmem:[%s4 + $0x40] sm:$0xff]
  %v35 = vld [vmem:[%s4 + $0x48] sm:$0xff]
  %v36 = vld [vmem:[%s4 + $0x50] sm:$0xff]
  %v37 = vld [vmem:[%s4 + $0x58] sm:$0xff]
  %v38 = vld [vmem:[%s4 + $0x60] sm:$0xff]
  %v39 = vld [vmem:[%s4 + $0x68] sm:$0xff]
  %v40 = vld [vmem:[%s4 + $0x70] sm:$0xff]
  %v41 = vld [vmem:[%s4 + $0x78] sm:$0xff]
  %42 = vmatprep.subr.mxu0 0.0
  %43 = vmatpush1.msra.mxu0 %v41
  %44 = vmatprep.subr.mxu0 0.0
  %45 = vmatpush1.msra.mxu0 %v40
  %46 = vmatprep.subr.mxu0 0.0
  %47 = vmatpush1.msra.mxu0 %v39
  %48 = vmatprep.subr.mxu0 0.0
  %49 = vmatpush1.msra.mxu0 %v38
  %50 = vmatprep.subr.mxu0 0.0
  %51 = vmatpush1.msra.mxu0 %v37
  %52 = vmatprep.subr.mxu0 0.0
  %53 = vmatpush1.msra.mxu0 %v36
  %54 = vmatprep.subr.mxu0 0.0
  %55 = vmatpush1.msra.mxu0 %v35
  %56 = vmatprep.subr.mxu0 0.0
  %57 = vmatpush1.msra.mxu0 %v34
  %58 = vmatprep.subr.mxu0 0.0
  %59 = vmatpush1.msra.mxu0 %v33
  %60 = vmatprep.subr.mxu0 0.0
  %61 = vmatpush1.msra.mxu0 %v32
  %62 = vmatprep.subr.mxu0 0.0
  %63 = vmatpush1.msra.mxu0 %v31
  %64 = vmatprep.subr.mxu0 0.0
  %65 = vmatpush1.msra.mxu0 %v30
  %66 = vmatprep.subr.mxu0 0.0
  %67 = vmatpush1.msra.mxu0 %v29
  %68 = vmatprep.subr.mxu0 0.0
  %69 = vmatpush1.msra.mxu0 %v28
  %70 = vmatprep.subr.mxu0 0.0
  %71 = vmatpush1.msra.mxu0 %v27
  %72 = vmatprep.subr.mxu0 0.0
  %73 = vmatpush1.msra.mxu0 %v26
  %74 = vmatprep.subr.mxu0 0.0
  %75 = vmatpush2.msra.mxu0 0.0
  %76 = vmatprep.subr.mxu0 0.0
  %77 = vmatpush2.msra.mxu0 0.0
  %78 = vmatprep.subr.mxu0 0.0
  %79 = vmatpush2.msra.mxu0 0.0
  %80 = vmatprep.subr.mxu0 0.0
  %81 = vmatpush2.msra.mxu0 0.0
  %82 = vmatprep.subr.mxu0 0.0
  %83 = vmatpush2.msra.mxu0 0.0
  %84 = vmatprep.subr.mxu0 0.0
  %85 = vmatpush2.msra.mxu0 0.0
  %86 = vmatprep.subr.mxu0 0.0
  %87 = vmatpush2.msra.mxu0 0.0
  %88 = vmatprep.subr.mxu0 0.0
  %89 = vmatpush2.msra.mxu0 0.0
  %90 = vmatprep.subr.mxu0 0.0
  %91 = vmatpush2.msra.mxu0 0.0
  %92 = vmatprep.subr.mxu0 0.0
  %93 = vmatpush2.msra.mxu0 0.0
  %94 = vmatprep.subr.mxu0 0.0
  %95 = vmatpush2.msra.mxu0 0.0
  %96 = vmatprep.subr.mxu0 0.0
  %97 = vmatpush2.msra.mxu0 0.0
  %98 = vmatprep.subr.mxu0 0.0
  %99 = vmatpush2.msra.mxu0 0.0
  %100 = vmatprep.subr.mxu0 0.0
  %101 = vmatpush2.msra.mxu0 0.0
  %102 = vmatprep.subr.mxu0 0.0
  %103 = vmatpush2.msra.mxu0 0.0
  %104 = vmatprep.subr.mxu0 0.0
  %105 = vmatpush2.msra.mxu0 0.0
  %106 = vmatprep.mubr.f32.mxu0 0.0
  %107 = vmatmul.mubr.f32.gmra.mxu0 %v24
  %v108 = vpop.f32.mrf.mxu0
  %v109 = vadd.f32 0.0, %v108
  %v110 = vpop.f32.mrf.mxu0
  %111 = vmatprep.mubr.f32.mxu0 0.0
  %112 = vmatmul.mubr.f32.gmra.mxu0 %v25
  %v113 = vpop.f32.mrf.mxu0
  %v114 = vadd.f32 0.0, %v113
  %v115 = vpop.f32.mrf.mxu0
  %116 = vdwg.mxu0
  %s117 = sld [smem:[#allocation3]]
  %v118 = vstv %s117
  %v119 = vmul.f32 %v109, %v118
  %v120 = vmul.f32 %v114, %v118
  %vm121 = vcmask 15360
  %122 = vst.msk [vmem:[#allocation2] sm:$0xff] %vm121, %v119
  %123 = vst.msk [vmem:[#allocation2 + $0x8] sm:$0xff] %vm121, %v120
  %v124 = vld [vmem:[%s2] sm:$0xff]
  %v125 = vld [vmem:[%s2 + $0x8] sm:$0xff]
  %v126 = vld [vmem:[%s2 + $0x10] sm:$0xff]
  %v127 = vld [vmem:[%s2 + $0x18] sm:$0xff]
  %v128 = vld [vmem:[%s2 + $0x20] sm:$0xff]
  %v129 = vld [vmem:[%s2 + $0x28] sm:$0xff]
  %v130 = vld [vmem:[%s2 + $0x30] sm:$0xff]
  %v131 = vld [vmem:[%s2 + $0x38] sm:$0xff]
  %v132 = vld [vmem:[%s2 + $0x40] sm:$0xff]
  %v133 = vld [vmem:[%s2 + $0x48] sm:$0xff]
  %v134 = vld [vmem:[%s2 + $0x50] sm:$0xff]
  %v135 = vld [vmem:[%s2 + $0x58] sm:$0xff]
  %v136 = vld [vmem:[%s2 + $0x60] sm:$0xff]
  %v137 = vld [vmem:[%s2 + $0x68] sm:$0xff]
  %v138 = vld [vmem:[%s2 + $0x70] sm:$0xff]
  %v139 = vld [vmem:[%s2 + $0x78] sm:$0xff]
  %v140 = vld [vmem:[%s3] sm:$0x1]
  %v142 = vlaneseq
  %v143 = vshrl.u32 %v142, 7
  %v144 = vsub.s32 0, %v143
  %v145 = vrot.slane %v140, %v144
  %147 = vmatprep.subr.mxu0 0.0
  %148 = vmatpush1.msra.mxu0 %v139
  %149 = vmatprep.subr.mxu0 0.0
  %150 = vmatpush1.msra.mxu0 %v138
  %151 = vmatprep.subr.mxu0 0.0
  %152 = vmatpush1.msra.mxu0 %v137
  %153 = vmatprep.subr.mxu0 0.0
  %154 = vmatpush1.msra.mxu0 %v136
  %155 = vmatprep.subr.mxu0 0.0
  %156 = vmatpush1.msra.mxu0 %v135
  %157 = vmatprep.subr.mxu0 0.0
  %158 = vmatpush1.msra.mxu0 %v134
  %159 = vmatprep.subr.mxu0 0.0
  %160 = vmatpush1.msra.mxu0 %v133
  %161 = vmatprep.subr.mxu0 0.0
  %162 = vmatpush1.msra.mxu0 %v132
  %163 = vmatprep.subr.mxu0 0.0
  %164 = vmatpush1.msra.mxu0 %v131
  %165 = vmatprep.subr.mxu0 0.0
  %166 = vmatpush1.msra.mxu0 %v130
  %167 = vmatprep.subr.mxu0 0.0
  %168 = vmatpush1.msra.mxu0 %v129
  %169 = vmatprep.subr.mxu0 0.0
  %170 = vmatpush1.msra.mxu0 %v128
  %171 = vmatprep.subr.mxu0 0.0
  %172 = vmatpush1.msra.mxu0 %v127
  %173 = vmatprep.subr.mxu0 0.0
  %174 = vmatpush1.msra.mxu0 %v126
  %175 = vmatprep.subr.mxu0 0.0
  %176 = vmatpush1.msra.mxu0 %v125
  %177 = vmatprep.subr.mxu0 0.0
  %178 = vmatpush1.msra.mxu0 %v124
  %179 = vmatprep.subr.mxu0 0.0
  %180 = vmatpush2.msra.mxu0 0.0
  %181 = vmatprep.subr.mxu0 0.0
  %182 = vmatpush2.msra.mxu0 0.0
  %183 = vmatprep.subr.mxu0 0.0
  %184 = vmatpush2.msra.mxu0 0.0
  %185 = vmatprep.subr.mxu0 0.0
  %186 = vmatpush2.msra.mxu0 0.0
  %187 = vmatprep.subr.mxu0 0.0
  %188 = vmatpush2.msra.mxu0 0.0
  %189 = vmatprep.subr.mxu0 0.0
  %190 = vmatpush2.msra.mxu0 0.0
  %191 = vmatprep.subr.mxu0 0.0
  %192 = vmatpush2.msra.mxu0 0.0
  %193 = vmatprep.subr.mxu0 0.0
  %194 = vmatpush2.msra.mxu0 0.0
  %195 = vmatprep.subr.mxu0 0.0
  %196 = vmatpush2.msra.mxu0 0.0
  %197 = vmatprep.subr.mxu0 0.0
  %198 = vmatpush2.msra.mxu0 0.0
  %199 = vmatprep.subr.mxu0 0.0
  %200 = vmatpush2.msra.mxu0 0.0
  %201 = vmatprep.subr.mxu0 0.0
  %202 = vmatpush2.msra.mxu0 0.0
  %203 = vmatprep.subr.mxu0 0.0
  %204 = vmatpush2.msra.mxu0 0.0
  %205 = vmatprep.subr.mxu0 0.0
  %206 = vmatpush2.msra.mxu0 0.0
  %207 = vmatprep.subr.mxu0 0.0
  %208 = vmatpush2.msra.mxu0 0.0
  %209 = vmatprep.subr.mxu0 0.0
  %210 = vmatpush2.msra.mxu0 0.0
  %211 = vmatprep.mubr.f32.mxu0 0.0
  %212 = vmatmul.mubr.f32.gmra.mxu0 %v24
  %v213 = vpop.f32.mrf.mxu0
  %v214 = vadd.f32 %v145, %v213
  %v215 = vpop.f32.mrf.mxu0
  %216 = vmatprep.mubr.f32.mxu0 0.0
  %217 = vmatmul.mubr.f32.gmra.mxu0 %v25
  %v218 = vpop.f32.mrf.mxu0
  %v219 = vadd.f32 %v145, %v218
  %v220 = vpop.f32.mrf.mxu0
  %221 = vdwg.mxu0
  %v222 = vld [vmem:[#allocation2] sm:$0xff]
  %v223 = vld [vmem:[#allocation2 + $0x8] sm:$0xff]
  %v224 = vld [vmem:[%s5] sm:$0x3]
  %226 = vset.pattern.permute.xlu0 0
  %227 = vperm.xlu0 %226, %v222
  %v228 = vpop.permute.xlu0 %227
  %231 = vset.pattern.permute.xlu0 0
  %232 = vperm.xlu0 %231, %v223
  %v233 = vpop.permute.xlu0 %232
  %v235 = vlaneseq
  %v236 = vshrl.u32 %v235, 7
  %v237 = vsub.s32 0, %v236
  %v238 = vrot.slane %v224, %v237
  %v239 = vmul.f32 %v228, %v238
  %v240 = vmul.f32 %v233, %v238
  %v241 = vadd.f32 %v214, %v239
  %v242 = vadd.f32 %v219, %v240
  %243 = vset.pattern.permute.xlu0 1
  %244 = vperm.xlu0 %243, %v222
  %v245 = vpop.permute.xlu0 %244
  %247 = vset.pattern.permute.xlu0 1
  %248 = vperm.xlu0 %247, %v223
  %v249 = vpop.permute.xlu0 %248
  %v251 = vlaneseq
  %v252 = vshrl.u32 %v251, 7
  %v253 = vsub.s32 1, %v252
  %v254 = vrot.slane %v224, %v253
  %v255 = vmul.f32 %v245, %v254
  %v256 = vmul.f32 %v249, %v254
  %v257 = vadd.f32 %v241, %v255
  %v258 = vadd.f32 %v242, %v256
  %259 = vst [vmem:[%s6] sm:$0xff] %v257
  %260 = vst [vmem:[%s6 + $0x8] sm:$0xff] %v258
  // Predicated region
  $region26: #{linear_lora_forward.1} parent=0 // pred_check
    _
  $region27: #{linear_lora_forward.1} parent=0 // pred_check_branch
    %262 = sbr.rel (0) target = $region29
  $region28: #{linear_lora_forward.1} parent=0 // pred_region
    _
  $region29: #{linear_lora_forward.1} parent=0 // pred_fallthru
    _
  // Predicated region
  $region30: #{linear_lora_forward.1} parent=0 // pred_check
    _
  $region31: #{linear_lora_forward.1} parent=0 // pred_check_branch
    %264 = sbr.rel (0) target = $region33
  $region32: #{linear_lora_forward.1} parent=0 // pred_region
    _
  $region33: #{linear_lora_forward.1} parent=0 // pred_fallthru
    _

</llo_original>
